<compile_context>
chip_gen: v6e
topology: v6e:2x2x1
jax: 0.10.0
libtpu: 0.0.40
codegen_flags: <defaults>
</compile_context>

<pallas_src>
import jax
import jax.numpy as jnp
from jax import lax
from jax.experimental import pallas as pl
from jax.experimental.pallas import tpu as pltpu


def _round_up(x, m):
    return ((x + m - 1) // m) * m


def _make_infonce_kernel(tq, tk, n_actual, n_pad, supervised):
    """Build the tiled InfoNCE kernel body (static shapes closed over)."""
    need_col_mask = n_pad > n_actual
    f32 = jnp.float32

    def kernel(feat_q_ref, feat_k_ref, *rest):
        if supervised:
            lcol_ref, lrow_ref, kappa_ref, out_ref, m_scr, p_scr, n_scr, qn_scr = rest
        else:
            kappa_ref, out_ref, m_scr, p_scr, n_scr, qn_scr = rest

        qi = pl.program_id(0)
        ki = pl.program_id(1)
        kappa = kappa_ref[0]

        # ---- first K step for this Q tile: normalize Q once, reset accumulators.
        @pl.when(ki == 0)
        def _():
            fq = feat_q_ref[...].astype(f32)
            ss = jnp.sum(fq * fq, axis=-1, keepdims=True)
            inv = lax.rsqrt(jnp.maximum(ss, f32(1e-24)))      # EUP rsqrt == 1/max(||f||,1e-12)
            # kappa folded into the Q operand; cast once to the MXU dtype.
            qn_scr[...] = (fq * (inv * kappa)).astype(qn_scr.dtype)
            m_scr[...] = jnp.zeros_like(m_scr)                # shared max starts at 0 (diag exp(0))
            p_scr[...] = jnp.zeros_like(p_scr)
            n_scr[...] = jnp.zeros_like(n_scr)

        # ---- normalize the streamed K tile (f32 math), cast operands for the MXU.
        fk = feat_k_ref[...].astype(f32)
        ssk = jnp.sum(fk * fk, axis=-1, keepdims=True)
        invk = lax.rsqrt(jnp.maximum(ssk, f32(1e-24)))
        kn = (fk * invk).astype(qn_scr.dtype)

        # (Tq, Tk) similarity: contract the last axis of BOTH operands (no transpose).
        sim = lax.dot_general(
            qn_scr[...], kn,
            dimension_numbers=(((1,), (1,)), ((), ())),
            preferred_element_type=f32,
        )

        # ---- masks from global indices (O(T) iotas, broadcast in the compares).
        rid = qi * tq + lax.broadcasted_iota(jnp.int32, (tq, 1), 0)   # (Tq, 1)
        cid = ki * tk + lax.broadcasted_iota(jnp.int32, (1, tk), 1)   # (1, Tk)
        diag = rid == cid
        if supervised:
            same = lcol_ref[...] == lrow_ref[...]                     # (Tq,1)==(1,Tk)
        else:
            same = (rid >> 1) == (cid >> 1)                           # target[i] = i // 2
        pos_b = same & (~diag)
        neg_b = ~same
        if need_col_mask:
            col_ok = cid < n_actual
            pos_b = pos_b & col_ok
            neg_b = neg_b & col_ok

        # ---- online shared-max, single-exp logsumexp accumulation.
        m_prev = m_scr[...]
        m_new = jnp.maximum(m_prev, jnp.max(sim, axis=-1, keepdims=True))
        scale = jnp.exp(m_prev - m_new)
        e = jnp.exp(sim - m_new)                                      # ONE exp, shared pos/neg
        zero = jnp.zeros_like(e)
        p_scr[...] = p_scr[...] * scale + jnp.sum(jnp.where(pos_b, e, zero),
                                                  axis=-1, keepdims=True)
        n_scr[...] = n_scr[...] * scale + jnp.sum(jnp.where(neg_b, e, zero),
                                                  axis=-1, keepdims=True)
        m_scr[...] = m_new

        # ---- finalize on the last K step; diagonal exp(0) contributes exp(-m) to both.
        #      (The PyTorch "-1000" entries underflow to exactly 0 in f32.)
        @pl.when(ki == pl.num_programs(1) - 1)
        def _():
            m = m_scr[...]
            em = jnp.exp(-m)
            lse_pos = m + jnp.log(p_scr[...] + em)
            lse_neg = m + jnp.log(n_scr[...] + em)
            out_ref[...] = lse_pos - lse_neg

    return kernel


def infonce_loss(output, unc, target, features, kappa, supervised=False,
                 block=256, mxu_dtype=jnp.bfloat16):
    """Mirror of InfoNCE.forward (output/unc/classifier do not enter the math).

    block: Q/K tile width. Use 256 on v6e/v7x, 128 on v5e (must be a multiple
    of 128 whenever it is smaller than the padded batch).
    mxu_dtype: dtype of the MXU matmul operands (bf16 = fast path; f32 = exact).
    """
    n, d = features.shape
    kappa = kappa.reshape((1,)).astype(jnp.float32)

    # Tile size / padding: tile must be a multiple of 8 (sublane) and, when it
    # tiles the batch, a multiple of 128 (lane) — 128/256 satisfy both.
    t = min(block, _round_up(n, 8))
    n_pad = _round_up(n, t)
    grid = (n_pad // t, n_pad // t)

    feats = features
    if n_pad > n:
        feats = jnp.pad(features, ((0, n_pad - n), (0, 0)))

    kernel = _make_infonce_kernel(t, t, n, n_pad, supervised)

    in_specs = [
        pl.BlockSpec((t, d), lambda qi, ki: (qi, 0)),          # Q feature tile (resident)
        pl.BlockSpec((t, d), lambda qi, ki: (ki, 0)),          # K feature tile (streamed)
    ]
    args = [feats, feats]
    if supervised:
        tgt = target.astype(jnp.int32)
        if n_pad > n:
            tgt = jnp.pad(tgt, (0, n_pad - n), constant_values=-1)
        args += [tgt.reshape(n_pad, 1), tgt.reshape(1, n_pad)]
        in_specs += [
            pl.BlockSpec((t, 1), lambda qi, ki: (qi, 0)),      # label column slice
            pl.BlockSpec((1, t), lambda qi, ki: (0, ki)),      # label row slice
        ]
    in_specs.append(pl.BlockSpec(memory_space=pltpu.MemorySpace.SMEM))   # kappa scalar
    args.append(kappa)

    out = pl.pallas_call(
        kernel,
        out_shape=jax.ShapeDtypeStruct((n_pad, 1), jnp.float32),
        grid_spec=pltpu.PrefetchScalarGridSpec(
            num_scalar_prefetch=0,
            grid=grid,
            in_specs=in_specs,
            out_specs=pl.BlockSpec((t, 1), lambda qi, ki: (qi, 0)),
            scratch_shapes=[
                pltpu.VMEM((t, 1), jnp.float32),   # running max m
                pltpu.VMEM((t, 1), jnp.float32),   # running pos sum
                pltpu.VMEM((t, 1), jnp.float32),   # running neg sum
                pltpu.VMEM((t, d), mxu_dtype),     # cached normalized*kappa Q tile
            ],
        ),
        compiler_params=pltpu.CompilerParams(
            dimension_semantics=("parallel", "arbitrary"),
        ),
    )(*args)

    per_example = out[:n, 0]
    return -jnp.sum(per_example) / jnp.float32(n)


def _reference(features, target, kappa, supervised=False):
    """Pure-JAX f32 reference mirroring the PyTorch forward exactly."""
    n = features.shape[0]
    fn = features / jnp.maximum(
        jnp.sqrt(jnp.sum(features * features, axis=-1, keepdims=True)), 1e-12)
    sim = fn @ fn.T * kappa[0]
    if not supervised:
        target = jnp.repeat(jnp.arange(n // 2, dtype=jnp.int32), 2)
    mask = (target[:, None] == target[None, :]).astype(jnp.float32)
    diag = jnp.eye(n, dtype=jnp.float32)
    pos_mask = mask - diag
    neg_mask = 1.0 - mask
    lse_pos = jax.scipy.special.logsumexp(sim * pos_mask + neg_mask * -1000.0, axis=-1)
    lse_neg = jax.scipy.special.logsumexp(sim * neg_mask + pos_mask * -1000.0, axis=-1)
    return -jnp.mean(lse_pos - lse_neg)


if __name__ == "__main__":
    key = jax.random.PRNGKey(0)
    k_feat, k_out, k_unc, k_tgt = jax.random.split(key, 4)

    N, D, C = 8, 32, 10          # batch (even), feature dim, num classes
    features = jax.random.normal(k_feat, (N, D), dtype=jnp.float32)
    output = jax.random.normal(k_out, (N, C), dtype=jnp.float32)     # unused by the loss
    unc = jax.random.uniform(k_unc, (N,), dtype=jnp.float32)         # unused by the loss
    target = jax.random.randint(k_tgt, (N,), 0, C, dtype=jnp.int32)
    kappa = jnp.ones((1,), dtype=jnp.float32) * 10.0                 # kappa_init = 10

    for supervised in (False, True):
        ref = _reference(features, target, kappa, supervised=supervised)

        # Exact path: f32 MXU operands -> matches the f32 reference tightly.
        loss_exact = infonce_loss(output, unc, target, features, kappa,
                                  supervised=supervised, mxu_dtype=jnp.float32)
        loss_exact = jax.block_until_ready(loss_exact)
        assert jnp.allclose(loss_exact, ref, atol=1e-4, rtol=1e-4), \
            (supervised, float(loss_exact), float(ref))

        # Fast path: bf16 MXU operands (recommended production config); the
        # similarity loses ~3 decimal digits, so verify with a looser tolerance.
        loss_fast = infonce_loss(output, unc, target, features, kappa,
                                 supervised=supervised, mxu_dtype=jnp.bfloat16)
        loss_fast = jax.block_until_ready(loss_fast)
        assert jnp.allclose(loss_fast, ref, atol=5e-2, rtol=5e-2), \
            (supervised, float(loss_fast), float(ref))

    print("KERNEL_OK")
</pallas_src>

<mosaic_0001>
module attributes {stable_mosaic.version = 11 : i64} {
  func.func @kernel(%arg0: i32, %arg1: i32, %arg2: memref<8x32xf32, #tpu.memory_space<vmem>>, %arg3: memref<8x32xf32, #tpu.memory_space<vmem>>, %arg4: memref<1xf32, #tpu.memory_space<smem>>, %arg5: memref<8x1xf32, #tpu.memory_space<vmem>>, %arg6: memref<8x1xf32, #tpu.memory_space<vmem>>, %arg7: memref<8x1xf32, #tpu.memory_space<vmem>>, %arg8: memref<8x1xf32, #tpu.memory_space<vmem>>, %arg9: memref<8x32xf32, #tpu.memory_space<vmem>>) attributes {dimension_semantics = [#tpu.dimension_semantics<parallel>, #tpu.dimension_semantics<arbitrary>], iteration_bounds = array<i64: 1, 1>, scalar_prefetch = 0 : i64, scratch_operands = 4 : i64, tpu.core_type = #tpu.core_type<tc>, window_params = [{transform_indices = @transform_0, window_bounds = array<i64: 8, 32>}, {transform_indices = @transform_1, window_bounds = array<i64: 8, 32>}, {transform_indices = @transform_2, window_bounds = array<i64: 1>}, {transform_indices = @transform_3, window_bounds = array<i64: 8, 1>}]} {
    %c0 = arith.constant 0 : index
    %0 = memref.load %arg4[%c0] : memref<1xf32, #tpu.memory_space<smem>>
    %c0_i32 = arith.constant 0 : i32
    %1 = arith.cmpi eq, %arg1, %c0_i32 : i32
    %2 = arith.extui %1 : i1 to i32
    %c0_i32_0 = arith.constant 0 : i32
    %3 = arith.cmpi ne, %2, %c0_i32_0 : i32
    scf.if %3 {
      %c0_29 = arith.constant 0 : index
      %c0_30 = arith.constant 0 : index
      %64 = vector.load %arg2[%c0_29, %c0_30] : memref<8x32xf32, #tpu.memory_space<vmem>>, vector<8x32xf32>
      %65 = arith.mulf %64, %64 : vector<8x32xf32>
      %cst_31 = arith.constant dense<0.000000e+00> : vector<8xf32>
      %66 = vector.multi_reduction <add>, %65, %cst_31 [1] : vector<8x32xf32> to vector<8xf32>
      %67 = vector.shape_cast %66 : vector<8xf32> to vector<8x1xf32>
      %cst_32 = arith.constant 1.000000e-24 : f32
      %68 = vector.broadcast %cst_32 : f32 to vector<8x1xf32>
      %69 = arith.maximumf %67, %68 : vector<8x1xf32>
      %70 = math.rsqrt %69 : vector<8x1xf32>
      %71 = vector.broadcast %0 : f32 to vector<8x1xf32>
      %72 = arith.mulf %70, %71 : vector<8x1xf32>
      %73 = vector.broadcast %72 : vector<8x1xf32> to vector<8x32xf32>
      %74 = arith.mulf %64, %73 : vector<8x32xf32>
      %c0_33 = arith.constant 0 : index
      %c0_34 = arith.constant 0 : index
      %75 = vector.load %arg9[%c0_33, %c0_34] : memref<8x32xf32, #tpu.memory_space<vmem>>, vector<8x32xf32>
      tpu.vector_store %arg9[%c0_33, %c0_34], %74 {strides = array<i32>} : memref<8x32xf32, #tpu.memory_space<vmem>>, vector<8x32xf32>,
      %cst_35 = arith.constant 0.000000e+00 : f32
      %76 = vector.broadcast %cst_35 : f32 to vector<8x1xf32>
      %c0_36 = arith.constant 0 : index
      %c0_37 = arith.constant 0 : index
      %77 = vector.load %arg6[%c0_36, %c0_37] : memref<8x1xf32, #tpu.memory_space<vmem>>, vector<8x1xf32>
      tpu.vector_store %arg6[%c0_36, %c0_37], %76 {strides = array<i32>} : memref<8x1xf32, #tpu.memory_space<vmem>>, vector<8x1xf32>,
      %cst_38 = arith.constant 0.000000e+00 : f32
      %78 = vector.broadcast %cst_38 : f32 to vector<8x1xf32>
      %c0_39 = arith.constant 0 : index
      %c0_40 = arith.constant 0 : index
      %79 = vector.load %arg7[%c0_39, %c0_40] : memref<8x1xf32, #tpu.memory_space<vmem>>, vector<8x1xf32>
      tpu.vector_store %arg7[%c0_39, %c0_40], %78 {strides = array<i32>} : memref<8x1xf32, #tpu.memory_space<vmem>>, vector<8x1xf32>,
      %cst_41 = arith.constant 0.000000e+00 : f32
      %80 = vector.broadcast %cst_41 : f32 to vector<8x1xf32>
      %c0_42 = arith.constant 0 : index
      %c0_43 = arith.constant 0 : index
      %81 = vector.load %arg8[%c0_42, %c0_43] : memref<8x1xf32, #tpu.memory_space<vmem>>, vector<8x1xf32>
      tpu.vector_store %arg8[%c0_42, %c0_43], %80 {strides = array<i32>} : memref<8x1xf32, #tpu.memory_space<vmem>>, vector<8x1xf32>,
    } else {
    }
    %c0_1 = arith.constant 0 : index
    %c0_2 = arith.constant 0 : index
    %4 = vector.load %arg3[%c0_1, %c0_2] : memref<8x32xf32, #tpu.memory_space<vmem>>, vector<8x32xf32>
    %5 = arith.mulf %4, %4 : vector<8x32xf32>
    %cst = arith.constant dense<0.000000e+00> : vector<8xf32>
    %6 = vector.multi_reduction <add>, %5, %cst [1] : vector<8x32xf32> to vector<8xf32>
    %7 = vector.shape_cast %6 : vector<8xf32> to vector<8x1xf32>
    %cst_3 = arith.constant 1.000000e-24 : f32
    %8 = vector.broadcast %cst_3 : f32 to vector<8x1xf32>
    %9 = arith.maximumf %7, %8 : vector<8x1xf32>
    %10 = math.rsqrt %9 : vector<8x1xf32>
    %11 = vector.broadcast %10 : vector<8x1xf32> to vector<8x32xf32>
    %12 = arith.mulf %4, %11 : vector<8x32xf32>
    %c0_4 = arith.constant 0 : index
    %c0_5 = arith.constant 0 : index
    %13 = vector.load %arg9[%c0_4, %c0_5] : memref<8x32xf32, #tpu.memory_space<vmem>>, vector<8x32xf32>
    %cst_6 = arith.constant dense<0.000000e+00> : vector<8x8xf32>
    %14 = tpu.matmul %13, %12, %cst_6 {dimension_numbers = #tpu.dot_dimension_numbers<[1], [1], [0], [0], [0, 0, 1, 0], [], []>} : vector<8x32xf32>, vector<8x32xf32>, vector<8x8xf32> -> vector<8x8xf32>
    %c8_i32 = arith.constant 8 : i32
    %15 = arith.muli %arg0, %c8_i32 : i32
    %16 = tpu.iota {dimensions = array<i32: 0>} : vector<8x1xi32>
    %17 = vector.broadcast %15 : i32 to vector<8x1xi32>
    %18 = arith.addi %17, %16 : vector<8x1xi32>
    %c8_i32_7 = arith.constant 8 : i32
    %19 = arith.muli %arg1, %c8_i32_7 : i32
    %20 = tpu.iota {dimensions = array<i32: 1>} : vector<1x8xi32>
    %21 = vector.broadcast %19 : i32 to vector<1x8xi32>
    %22 = arith.addi %21, %20 : vector<1x8xi32>
    %23 = vector.broadcast %18 : vector<8x1xi32> to vector<8x8xi32>
    %24 = vector.broadcast %22 : vector<1x8xi32> to vector<8x8xi32>
    %25 = arith.cmpi eq, %23, %24 : vector<8x8xi32>
    %c1_i32 = arith.constant 1 : i32
    %26 = vector.broadcast %c1_i32 : i32 to vector<8x1xi32>
    %27 = arith.shrsi %18, %26 : vector<8x1xi32>
    %c1_i32_8 = arith.constant 1 : i32
    %28 = vector.broadcast %c1_i32_8 : i32 to vector<1x8xi32>
    %29 = arith.shrsi %22, %28 : vector<1x8xi32>
    %30 = vector.broadcast %27 : vector<8x1xi32> to vector<8x8xi32>
    %31 = vector.broadcast %29 : vector<1x8xi32> to vector<8x8xi32>
    %32 = arith.cmpi eq, %30, %31 : vector<8x8xi32>
    %cst_9 = arith.constant dense<true> : vector<8x8xi1>
    %33 = arith.xori %25, %cst_9 : vector<8x8xi1>
    %34 = arith.andi %32, %33 : vector<8x8xi1>
    %cst_10 = arith.constant dense<true> : vector<8x8xi1>
    %35 = arith.xori %32, %cst_10 : vector<8x8xi1>
    %c0_11 = arith.constant 0 : index
    %c0_12 = arith.constant 0 : index
    %36 = vector.load %arg6[%c0_11, %c0_12] : memref<8x1xf32, #tpu.memory_space<vmem>>, vector<8x1xf32>
    %cst_13 = arith.constant dense<0xFF800000> : vector<8xf32>
    %37 = vector.multi_reduction <maximumf>, %14, %cst_13 [1] : vector<8x8xf32> to vector<8xf32>
    %38 = vector.shape_cast %37 : vector<8xf32> to vector<8x1xf32>
    %39 = arith.maximumf %36, %38 : vector<8x1xf32>
    %40 = arith.subf %36, %39 : vector<8x1xf32>
    %41 = math.exp %40 : vector<8x1xf32>
    %42 = vector.broadcast %39 : vector<8x1xf32> to vector<8x8xf32>
    %43 = arith.subf %14, %42 : vector<8x8xf32>
    %44 = math.exp %43 : vector<8x8xf32>
    %cst_14 = arith.constant 0.000000e+00 : f32
    %45 = vector.broadcast %cst_14 : f32 to vector<8x8xf32>
    %c0_15 = arith.constant 0 : index
    %c0_16 = arith.constant 0 : index
    %46 = vector.load %arg7[%c0_15, %c0_16] : memref<8x1xf32, #tpu.memory_space<vmem>>, vector<8x1xf32>
    %47 = arith.mulf %46, %41 : vector<8x1xf32>
    %48 = arith.select %34, %44, %45 : vector<8x8xi1>, vector<8x8xf32>
    %cst_17 = arith.constant dense<0.000000e+00> : vector<8xf32>
    %49 = vector.multi_reduction <add>, %48, %cst_17 [1] : vector<8x8xf32> to vector<8xf32>
    %50 = vector.shape_cast %49 : vector<8xf32> to vector<8x1xf32>
    %51 = arith.addf %47, %50 : vector<8x1xf32>
    %c0_18 = arith.constant 0 : index
    %c0_19 = arith.constant 0 : index
    %52 = vector.load %arg7[%c0_18, %c0_19] : memref<8x1xf32, #tpu.memory_space<vmem>>, vector<8x1xf32>
    tpu.vector_store %arg7[%c0_18, %c0_19], %51 {strides = array<i32>} : memref<8x1xf32, #tpu.memory_space<vmem>>, vector<8x1xf32>,
    %c0_20 = arith.constant 0 : index
    %c0_21 = arith.constant 0 : index
    %53 = vector.load %arg8[%c0_20, %c0_21] : memref<8x1xf32, #tpu.memory_space<vmem>>, vector<8x1xf32>
    %54 = arith.mulf %53, %41 : vector<8x1xf32>
    %55 = arith.select %35, %44, %45 : vector<8x8xi1>, vector<8x8xf32>
    %cst_22 = arith.constant dense<0.000000e+00> : vector<8xf32>
    %56 = vector.multi_reduction <add>, %55, %cst_22 [1] : vector<8x8xf32> to vector<8xf32>
    %57 = vector.shape_cast %56 : vector<8xf32> to vector<8x1xf32>
    %58 = arith.addf %54, %57 : vector<8x1xf32>
    %c0_23 = arith.constant 0 : index
    %c0_24 = arith.constant 0 : index
    %59 = vector.load %arg8[%c0_23, %c0_24] : memref<8x1xf32, #tpu.memory_space<vmem>>, vector<8x1xf32>
    tpu.vector_store %arg8[%c0_23, %c0_24], %58 {strides = array<i32>} : memref<8x1xf32, #tpu.memory_space<vmem>>, vector<8x1xf32>,
    %c0_25 = arith.constant 0 : index
    %c0_26 = arith.constant 0 : index
    %60 = vector.load %arg6[%c0_25, %c0_26] : memref<8x1xf32, #tpu.memory_space<vmem>>, vector<8x1xf32>
    tpu.vector_store %arg6[%c0_25, %c0_26], %39 {strides = array<i32>} : memref<8x1xf32, #tpu.memory_space<vmem>>, vector<8x1xf32>,
    %c0_i32_27 = arith.constant 0 : i32
    %61 = arith.cmpi eq, %arg1, %c0_i32_27 : i32
    %62 = arith.extui %61 : i1 to i32
    %c0_i32_28 = arith.constant 0 : i32
    %63 = arith.cmpi ne, %62, %c0_i32_28 : i32
    scf.if %63 {
      %c0_29 = arith.constant 0 : index
      %c0_30 = arith.constant 0 : index
      %64 = vector.load %arg6[%c0_29, %c0_30] : memref<8x1xf32, #tpu.memory_space<vmem>>, vector<8x1xf32>
      %cst_31 = arith.constant 0.000000e+00 : f32
      %65 = vector.broadcast %cst_31 : f32 to vector<8x1xf32>
      %66 = arith.subf %65, %64 : vector<8x1xf32>
      %67 = math.exp %66 : vector<8x1xf32>
      %c0_32 = arith.constant 0 : index
      %c0_33 = arith.constant 0 : index
      %68 = vector.load %arg7[%c0_32, %c0_33] : memref<8x1xf32, #tpu.memory_space<vmem>>, vector<8x1xf32>
      %69 = arith.addf %68, %67 : vector<8x1xf32>
      %70 = math.log %69 : vector<8x1xf32>
      %71 = arith.addf %64, %70 : vector<8x1xf32>
      %c0_34 = arith.constant 0 : index
      %c0_35 = arith.constant 0 : index
      %72 = vector.load %arg8[%c0_34, %c0_35] : memref<8x1xf32, #tpu.memory_space<vmem>>, vector<8x1xf32>
      %73 = arith.addf %72, %67 : vector<8x1xf32>
      %74 = math.log %73 : vector<8x1xf32>
      %75 = arith.addf %64, %74 : vector<8x1xf32>
      %76 = arith.subf %71, %75 : vector<8x1xf32>
      %c0_36 = arith.constant 0 : index
      %c0_37 = arith.constant 0 : index
      %77 = vector.load %arg5[%c0_36, %c0_37] : memref<8x1xf32, #tpu.memory_space<vmem>>, vector<8x1xf32>
      tpu.vector_store %arg5[%c0_36, %c0_37], %76 {strides = array<i32>} : memref<8x1xf32, #tpu.memory_space<vmem>>, vector<8x1xf32>,
    } else {
    }
    return
  }
  func.func @transform_0(%arg0: i32, %arg1: i32) -> (i32, i32) {
    %c0_i32 = arith.constant 0 : i32
    %c0_i32_0 = arith.constant 0 : i32
    return %arg0, %c0_i32 : i32, i32
  }
  func.func @transform_1(%arg0: i32, %arg1: i32) -> (i32, i32) {
    %c0_i32 = arith.constant 0 : i32
    %c0_i32_0 = arith.constant 0 : i32
    return %arg1, %c0_i32 : i32, i32
  }
  func.func @transform_2(%arg0: i32, %arg1: i32) -> i32 {
    %c0_i32 = arith.constant 0 : i32
    %c0_i32_0 = arith.constant 0 : i32
    return %c0_i32 : i32
  }
  func.func @transform_3(%arg0: i32, %arg1: i32) -> (i32, i32) {
    %c0_i32 = arith.constant 0 : i32
    %c0_i32_0 = arith.constant 0 : i32
    return %arg0, %c0_i32 : i32, i32
  }
}

</mosaic_0001>

<llo_original>
// kernel: tpu_custom_call.1
$region0: #{tpu_custom_call.1}
  #allocation0 [shape = 'u32[]', space=smem, size = 0x4, offset = 0x4, fixed_abs, tag = 'smem constant byte address 0x4 - core index']
  #allocation1 [shape = 'u32[144,128]{1,0:T(1,128)}', space=vmem, size = 0x12000, scoped, tag = 'internal scratch']
  #allocation2 [shape = 'f32[8,1]{1,0:T(8,128)}', space=vmem, size = 0x1000, scoped, tag = 'scratch operand']
  #allocation3 [shape = 'f32[8,1]{1,0:T(8,128)}', space=vmem, size = 0x1000, scoped, tag = 'scratch operand']
  #allocation4 [shape = 'f32[8,1]{1,0:T(8,128)}', space=vmem, size = 0x1000, scoped, tag = 'scratch operand']
  #allocation5 [shape = 'f32[8,32]{1,0:T(8,128)}', space=vmem, size = 0x1000, scoped, tag = 'scratch operand']
  #allocation6 [shape = 'f32[1]{0:T(128)S(6)}', space=smem, size = 0x200, scoped, tag = 'scoped memory for tpu_custom_call.1']
  %s0 = inlined_call_operand.hbm [shape: f32[8,32], index: 0, kind: input, shape index: {}]
  %s1 = inlined_call_operand.hbm [shape: f32[8,32], index: 1, kind: input, shape index: {}]
  %s2 = inlined_call_operand.<no memory space> [shape: f32[1], index: 2, kind: input, shape index: {}]
  %s3 = inlined_call_operand.vmem [shape: f32[8,1], index: 3, kind: output, shape index: {}]
  %s4 = sld [smem:[#allocation0]]
  $region38: #{tpu_custom_call.1} parent=0
    _
  %s6 = ssub.s32 1, %s4
  %s7 = scalar_select 0, %s6, %s4
  %8 = sst [smem:[#allocation6]] %s2
  $region1: #{tpu_custom_call.1} parent=0
    #allocation7 [shape = 'u8[4096]{0}', space=vmem, size = 0x1000, scoped, tag = 'input window, operand 0, single buffered']
    #allocation8 [shape = 's32[1]{0}', space=sflag, size = 0x4, scoped, tag = 'scoped memory for tpu_custom_call.1']
    #allocation9 [shape = 'u8[4096]{0}', space=vmem, size = 0x1000, scoped, tag = 'input window, operand 1, single buffered']
    #allocation10 [shape = 's32[1]{0}', space=sflag, size = 0x4, scoped, tag = 'scoped memory for tpu_custom_call.1']
    %9 = vsyncpa [#allocation8], 0
    %10 = vsyncpa [#allocation10], 0
    // Predicated region
    $region2: #{tpu_custom_call.1} parent=1 // pred_check
      _
    $region3: #{tpu_custom_call.1} parent=1 // pred_check_branch
      %12 = sbr.rel (0) target = $region5
    $region4: #{tpu_custom_call.1} parent=1 // pred_region
      %s14 = ssub.s32 128, 128
      %15 = vsyncadd [#allocation8], %s14
      %s17 = sshll.u32 [#allocation7], 4
      %s18 = int_to_ptr.vmem [resolvable:$true] %s17
      %20 = dma.hbm_to_vmem [thread:$0]  %s0, 128, %s18, [#allocation8]
    $region5: #{tpu_custom_call.1} parent=1 // pred_fallthru
      _
    // Predicated region
    $region6: #{tpu_custom_call.1} parent=1 // pred_check
      _
    $region7: #{tpu_custom_call.1} parent=1 // pred_check_branch
      %22 = sbr.rel (0) target = $region9
    $region8: #{tpu_custom_call.1} parent=1 // pred_region
      %s24 = ssub.s32 128, 128
      %25 = vsyncadd [#allocation10], %s24
      %s27 = sshll.u32 [#allocation9], 4
      %s28 = int_to_ptr.vmem [resolvable:$true] %s27
      %30 = dma.hbm_to_vmem [thread:$0]  %s1, 128, %s28, [#allocation10]
    $region9: #{tpu_custom_call.1} parent=1 // pred_fallthru
      _
    // Predicated region
    $region10: #{tpu_custom_call.1} parent=1 // pred_check
      _
    $region11: #{tpu_custom_call.1} parent=1 // pred_check_branch
      %32 = sbr.rel (0) target = $region13
    $region12: #{tpu_custom_call.1} parent=1 // pred_region
      _
    $region13: #{tpu_custom_call.1} parent=1 // pred_fallthru
      _
    // Predicated region
    $region14: #{tpu_custom_call.1} parent=1 // pred_check
      _
    $region15: #{tpu_custom_call.1} parent=1 // pred_check_branch
      %34 = sbr.rel (0) target = $region17
    $region16: #{tpu_custom_call.1} parent=1 // pred_region
      %35 = dma.done [#allocation8], 128
    $region17: #{tpu_custom_call.1} parent=1 // pred_fallthru
      _
    // Predicated region
    $region18: #{tpu_custom_call.1} parent=1 // pred_check
      _
    $region19: #{tpu_custom_call.1} parent=1 // pred_check_branch
      %37 = sbr.rel (0) target = $region21
    $region20: #{tpu_custom_call.1} parent=1 // pred_region
      %38 = dma.done [#allocation10], 128
    $region21: #{tpu_custom_call.1} parent=1 // pred_fallthru
      _
    %s39 = sld [smem:[#allocation6]]
    %p40 = scmp.eq.s32.totalorder 0, 0
    // Predicated region
    $region22: #{tpu_custom_call.1} parent=1 // pred_check
      %p41 = pneg %p40
    $region23: #{tpu_custom_call.1} parent=1 // pred_check_branch
      %43 = sbr.rel (%p41) target = $region25
    $region24: #{tpu_custom_call.1} parent=1 // pred_region
      %v44 = vld [vmem:[#allocation7] sm:$0xff]
      %v45 = vmul.f32 %v44, %v44
      %vm46 = vcmask 261120
      %v47 = vsel %vm46, %v45, 0.0
      %48 = vadd.xlane.f32.xlu0 %v47
      %v49 = vpop.xlane.xlu0 %48
      %v50 = vmax.f32 %v49, 1e-24
      %v51 = vrsqrt.pop %v50
      %v52 = vstv %s39
      %v53 = vmul.f32 %v51, %v52
      %v54 = vmul.f32 %v44, %v53
      %55 = vst.msk [vmem:[#allocation5] sm:$0xff] %vm46, %v54
      %vm56 = vcmask 7168
      %57 = vst.msk [vmem:[#allocation2] sm:$0xff] %vm56, 0.0
      %58 = vst.msk [vmem:[#allocation3] sm:$0xff] %vm56, 0.0
      %59 = vst.msk [vmem:[#allocation4] sm:$0xff] %vm56, 0.0
    $region25: #{tpu_custom_call.1} parent=1 // pred_fallthru
      _
    %v60 = vld [vmem:[#allocation9] sm:$0xff]
    %v61 = vmul.f32 %v60, %v60
    %vm62 = vcmask 261120
    %v63 = vsel %vm62, %v61, 0.0
    %64 = vadd.xlane.f32.xlu0 %v63
    %v65 = vpop.xlane.xlu0 %64
    %v66 = vmax.f32 %v65, 1e-24
    %v67 = vrsqrt.pop %v66
    %v68 = vmul.f32 %v60, %v67
    %v69 = vld [vmem:[#allocation5] sm:$0xff]
    %v71 = vsel %vm62, %v69, 0
    %v74 = vsel %vm62, %v68, 0
    %76 = vmatprep.subr.mxu0 0.0
    %77 = vmatpush1.xpose.msra.mxu0 0.0
    %78 = vmatprep.subr.mxu0 0.0
    %79 = vmatpush1.xpose.msra.mxu0 0.0
    %80 = vmatprep.subr.mxu0 0.0
    %81 = vmatpush1.xpose.msra.mxu0 0.0
    %82 = vmatprep.subr.mxu0 0.0
    %83 = vmatpush1.xpose.msra.mxu0 0.0
    %84 = vmatprep.subr.mxu0 0.0
    %85 = vmatpush1.xpose.msra.mxu0 0.0
    %86 = vmatprep.subr.mxu0 0.0
    %87 = vmatpush1.xpose.msra.mxu0 0.0
    %88 = vmatprep.subr.mxu0 0.0
    %89 = vmatpush1.xpose.msra.mxu0 0.0
    %90 = vmatprep.subr.mxu0 0.0
    %91 = vmatpush1.xpose.msra.mxu0 0.0
    %92 = vmatprep.subr.mxu0 0.0
    %93 = vmatpush1.xpose.msra.mxu0 0.0
    %94 = vmatprep.subr.mxu0 0.0
    %95 = vmatpush1.xpose.msra.mxu0 0.0
    %96 = vmatprep.subr.mxu0 0.0
    %97 = vmatpush1.xpose.msra.mxu0 0.0
    %98 = vmatprep.subr.mxu0 0.0
    %99 = vmatpush1.xpose.msra.mxu0 0.0
    %100 = vmatprep.subr.mxu0 0.0
    %101 = vmatpush1.xpose.msra.mxu0 0.0
    %102 = vmatprep.subr.mxu0 0.0
    %103 = vmatpush1.xpose.msra.mxu0 0.0
    %104 = vmatprep.subr.mxu0 0.0
    %105 = vmatpush1.xpose.msra.mxu0 0.0
    %106 = vmatprep.subr.mxu0 0.0
    %107 = vmatpush1.xpose.msra.mxu0 %v74
    %108 = vmatprep.subr.mxu0 0.0
    %109 = vmatpush2.xpose.msra.mxu0 0.0
    %110 = vmatprep.subr.mxu0 0.0
    %111 = vmatpush2.xpose.msra.mxu0 0.0
    %112 = vmatprep.subr.mxu0 0.0
    %113 = vmatpush2.xpose.msra.mxu0 0.0
    %114 = vmatprep.subr.mxu0 0.0
    %115 = vmatpush2.xpose.msra.mxu0 0.0
    %116 = vmatprep.subr.mxu0 0.0
    %117 = vmatpush2.xpose.msra.mxu0 0.0
    %118 = vmatprep.subr.mxu0 0.0
    %119 = vmatpush2.xpose.msra.mxu0 0.0
    %120 = vmatprep.subr.mxu0 0.0
    %121 = vmatpush2.xpose.msra.mxu0 0.0
    %122 = vmatprep.subr.mxu0 0.0
    %123 = vmatpush2.xpose.msra.mxu0 0.0
    %124 = vmatprep.subr.mxu0 0.0
    %125 = vmatpush2.xpose.msra.mxu0 0.0
    %126 = vmatprep.subr.mxu0 0.0
    %127 = vmatpush2.xpose.msra.mxu0 0.0
    %128 = vmatprep.subr.mxu0 0.0
    %129 = vmatpush2.xpose.msra.mxu0 0.0
    %130 = vmatprep.subr.mxu0 0.0
    %131 = vmatpush2.xpose.msra.mxu0 0.0
    %132 = vmatprep.subr.mxu0 0.0
    %133 = vmatpush2.xpose.msra.mxu0 0.0
    %134 = vmatprep.subr.mxu0 0.0
    %135 = vmatpush2.xpose.msra.mxu0 0.0
    %136 = vmatprep.subr.mxu0 0.0
    %137 = vmatpush2.xpose.msra.mxu0 0.0
    %138 = vmatprep.subr.mxu0 0.0
    %139 = vmatpush2.xpose.msra.mxu0 0.0
    %140 = vmatprep.mubr.f32.mxu0 0.0
    %141 = vmatmul.mubr.f32.gmra.mxu0 %v71
    %v142 = vpop.f32.mrf.mxu0
    %v143 = vadd.f32 0.0, %v142
    %v144 = vpop.f32.mrf.mxu0
    %145 = vdwg.mxu0
    %s146 = smul.u32 0, 8
    %v147 = vlaneseq
    %v148 = vshrl.u32 %v147, 7
    %v149 = vstv %s146
    %v150 = vadd.s32 %v149, %v148
    %s151 = smul.u32 0, 8
    %v152 = vlaneseq
    %v153 = vand.u32 %v152, 127
    %v154 = vstv %s151
    %v155 = vadd.s32 %v154, %v153
    %vm156 = vcmp.eq.s32.totalorder %v150, %v155
    %v157 = vshra.s32 %v150, 1
    %v158 = vshra.s32 %v155, 1
    %vm159 = vcmp.eq.s32.totalorder %v157, %v158
    %vm160 = vmxor %vm156, 1
    %vm161 = vmand %vm159, %vm160
    %vm162 = vmxor %vm159, 1
    %v163 = vld [vmem:[#allocation2] sm:$0xff]
    %vm164 = vcmask 64512
    %v165 = vsel %vm164, %v143, -inf
    %166 = vmax.xlane.f32.xlu0 %v165
    %v167 = vpop.xlane.xlu0 %166
    %v168 = vmax.f32 %v163, %v167
    %v169 = vsub.f32 %v163, %v168
    %v170 = vmul.f32 %v169, 1.442695
    %v171 = vpow.pop %v170
    %173 = vset.pattern.permute.xlu0 0
    %174 = vperm.xlu0 %173, %v168
    %v175 = vpop.permute.xlu0 %174
    %v177 = vsub.f32 %v143, %v175
    %v178 = vmul.f32 %v177, 1.442695
    %v179 = vpow.pop %v178
    %v180 = vld [vmem:[#allocation3] sm:$0xff]
    %v181 = vmul.f32 %v180, %v171
    %v182 = vsel %vm161, %v179, 0.0
    %v183 = vsel %vm164, %v182, 0.0
    %184 = vadd.xlane.f32.xlu0 %v183
    %v185 = vpop.xlane.xlu0 %184
    %v186 = vadd.f32 %v181, %v185
    %vm187 = vcmask 7168
    %188 = vst.msk [vmem:[#allocation3] sm:$0xff] %vm187, %v186
    %v189 = vld [vmem:[#allocation4] sm:$0xff]
    %v190 = vmul.f32 %v189, %v171
    %v191 = vsel %vm162, %v179, 0.0
    %v192 = vsel %vm164, %v191, 0.0
    %193 = vadd.xlane.f32.xlu0 %v192
    %v194 = vpop.xlane.xlu0 %193
    %v195 = vadd.f32 %v190, %v194
    %196 = vst.msk [vmem:[#allocation4] sm:$0xff] %vm187, %v195
    %197 = vst.msk [vmem:[#allocation2] sm:$0xff] %vm187, %v168
    // Predicated region
    $region26: #{tpu_custom_call.1} parent=1 // pred_check
      %p198 = pneg %p40
    $region27: #{tpu_custom_call.1} parent=1 // pred_check_branch
      %200 = sbr.rel (%p198) target = $region29
    $region28: #{tpu_custom_call.1} parent=1 // pred_region
      %v201 = vld [vmem:[#allocation2] sm:$0xff]
      %v202 = vsub.f32 0.0, %v201
      %v203 = vmul.f32 %v202, 1.442695
      %v204 = vpow.pop %v203
      %v205 = vld [vmem:[#allocation3] sm:$0xff]
      %v206 = vadd.f32 %v205, %v204
      %v207 = vlog2.pop %v206
      %v208 = vmul.f32 %v207, 0.6931472
      %v209 = vadd.f32 %v201, %v208
      %v210 = vld [vmem:[#allocation4] sm:$0xff]
      %v211 = vadd.f32 %v210, %v204
      %v212 = vlog2.pop %v211
      %v213 = vmul.f32 %v212, 0.6931472
      %v214 = vadd.f32 %v201, %v213
      %v215 = vsub.f32 %v209, %v214
      %216 = vst.msk [vmem:[%s3] sm:$0xff] %vm187, %v215
    $region29: #{tpu_custom_call.1} parent=1 // pred_fallthru
      _
    // Predicated region
    $region30: #{tpu_custom_call.1} parent=1 // pred_check
      _
    $region31: #{tpu_custom_call.1} parent=1 // pred_check_branch
      %218 = sbr.rel (0) target = $region33
    $region32: #{tpu_custom_call.1} parent=1 // pred_region
      _
    $region33: #{tpu_custom_call.1} parent=1 // pred_fallthru
      _
    // Predicated region
    $region34: #{tpu_custom_call.1} parent=1 // pred_check
      _
    $region35: #{tpu_custom_call.1} parent=1 // pred_check_branch
      %220 = sbr.rel (0) target = $region37
    $region36: #{tpu_custom_call.1} parent=1 // pred_region
      _
    $region37: #{tpu_custom_call.1} parent=1 // pred_fallthru
      _
    %221 = vsyncpa [#allocation8], 1
    %222 = vsyncpa [#allocation10], 1

</llo_original>
